<compile_context>
chip_gen: v6e
topology: v6e:2x2x1
jax: 0.10.0
libtpu: 0.0.40
codegen_flags: <defaults>
</compile_context>

<pallas_src>
import jax
import jax.numpy as jnp
import numpy as np
from jax.experimental import pallas as pl
from jax.experimental.pallas import tpu as pltpu

K1 = 7   # conv1 kernel size
K2 = 5   # conv2 kernel size
C2 = 3   # conv2 out channels


def cnn_kernel(x1_ref, x2_ref, w1t_ref, b1_ref, w2t_ref, b2_ref,
               wfc_c_ref, wfc_x_ref, bfc_ref, o_ref):
    f32 = jnp.float32
    bf16 = jnp.bfloat16

    # conv1: one MXU matmul (Toeplitz-packed weight, columns = [even t | odd t], time-major x H)
    y1 = jnp.dot(x1_ref[...].astype(bf16), w1t_ref[...], preferred_element_type=f32)
    half1 = y1.shape[1] // 2
    # maxpool1 = one wide VPU max of the two halves; bias added after the max (equivalent)
    p1 = jnp.maximum(y1[:, :half1], y1[:, half1:]) + b1_ref[...]          # (BB, P1*H)

    # conv2: one MXU matmul (columns = [even tau | odd tau], channel-major within each half)
    y2 = jnp.dot(p1.astype(bf16), w2t_ref[...], preferred_element_type=f32)
    half2 = y2.shape[1] // 2
    p2 = jnp.maximum(y2[:, :half2], y2[:, half2:]) + b2_ref[...]          # (BB, C2*P2), PyTorch flatten order

    # fc as two dots (conv features + covariates) -> no lane concatenation
    out = jnp.dot(p2.astype(bf16), wfc_c_ref[...], preferred_element_type=f32)
    out = out + jnp.dot(x2_ref[...].astype(bf16), wfc_x_ref[...], preferred_element_type=f32)
    o_ref[...] = out + bfc_ref[...]


def _pack_conv1(w1, D_in, H, P1):
    """Toeplitz weight (D_in, 2*P1*H): column j -> timestep t_all[j//H], channel j%H."""
    w1f = w1[:, 0, :]                                            # (H, K1)
    t_all = np.concatenate([2 * np.arange(P1), 2 * np.arange(P1) + 1])
    col_t = np.repeat(t_all, H)
    col_h = np.tile(np.arange(H), 2 * P1)
    k = np.arange(D_in)[:, None] - col_t[None, :]
    valid = (k >= 0) & (k < K1)
    kc = np.clip(k, 0, K1 - 1)
    return (w1f[col_h[None, :], kc] * valid).astype(jnp.bfloat16)


def _pack_conv2(w2, H, P1, P2):
    """Toeplitz weight (P1*H, 2*P2*C2): row = t*H + h; column (within a half) = c*P2 + s."""
    s = np.arange(P2)
    col_c = np.concatenate([np.repeat(np.arange(C2), P2)] * 2)
    col_tau = np.concatenate([np.tile(2 * s, C2), np.tile(2 * s + 1, C2)])
    row_t = np.repeat(np.arange(P1), H)
    row_h = np.tile(np.arange(H), P1)
    k = row_t[:, None] - col_tau[None, :]
    valid = (k >= 0) & (k < K2)
    kc = np.clip(k, 0, K2 - 1)
    return (w2[col_c[None, :], row_h[:, None], kc] * valid).astype(jnp.bfloat16)


@jax.jit
def cnn_forward(x1, x2, w1, b1, w2, b2, wfc, bfc):
    B, D_in = x1.shape
    H = w1.shape[0]
    p = x2.shape[1]
    L1 = D_in - (K1 - 1)
    P1 = L1 // 2
    L2 = P1 - (K2 - 1)
    P2 = L2 // 2
    nflat = C2 * P2
    assert wfc.shape == (1, nflat + p), "fc weight must match 3*P2 + p features"

    # Pack parameters (glue, traced once under jit).
    w1t = _pack_conv1(w1, D_in, H, P1)                           # (D_in, 2*P1*H) bf16
    b1m = jnp.tile(b1, P1).reshape(1, P1 * H).astype(jnp.float32)
    w2t = _pack_conv2(w2, H, P1, P2)                             # (P1*H, 2*P2*C2) bf16
    b2m = jnp.repeat(b2, P2).reshape(1, nflat).astype(jnp.float32)
    wfc_c = wfc[:, :nflat].T.astype(jnp.bfloat16)                # (nflat, 1)
    wfc_x = wfc[:, nflat:].T.astype(jnp.bfloat16)                # (p, 1)
    bfcm = bfc.reshape(1, 1).astype(jnp.float32)

    # Batch blocking: multiple-of-8 blocks; parallel grid axis (megacore on v7x).
    BB = 512 if B >= 512 else (-(-B // 8) * 8)
    Bp = -(-B // BB) * BB
    x1p = jnp.pad(x1, ((0, Bp - B), (0, 0))) if Bp != B else x1
    x2p = jnp.pad(x2, ((0, Bp - B), (0, 0))) if Bp != B else x2

    def const(shape):
        return pl.BlockSpec(shape, lambda i: (0, 0))             # weights stay resident across blocks

    out = pl.pallas_call(
        cnn_kernel,
        out_shape=jax.ShapeDtypeStruct((Bp, 1), jnp.float32),
        grid_spec=pltpu.PrefetchScalarGridSpec(
            num_scalar_prefetch=0,
            grid=(Bp // BB,),
            in_specs=[
                pl.BlockSpec((BB, D_in), lambda i: (i, 0)),
                pl.BlockSpec((BB, p), lambda i: (i, 0)),
                const(w1t.shape), const(b1m.shape),
                const(w2t.shape), const(b2m.shape),
                const(wfc_c.shape), const(wfc_x.shape), const(bfcm.shape),
            ],
            out_specs=pl.BlockSpec((BB, 1), lambda i: (i, 0)),
        ),
        compiler_params=pltpu.CompilerParams(dimension_semantics=("parallel",)),
    )(x1p, x2p, w1t, b1m, w2t, b2m, wfc_c, wfc_x, bfcm)
    return out[:B]


def reference(x1, x2, w1, b1, w2, b2, wfc, bfc):
    """Pure-JAX f32 mirror of the PyTorch forward (NCL conv layout), for validation."""
    B = x1.shape[0]
    hi = jax.lax.Precision.HIGHEST
    x = x1[:, None, :]                                             # (B, 1, L)
    y = jax.lax.conv_general_dilated(x, w1, (1,), "VALID",
                                     dimension_numbers=("NCH", "OIH", "NCH"),
                                     precision=hi) + b1[None, :, None]
    y = y[:, :, :(y.shape[2] // 2) * 2]
    y = y.reshape(B, y.shape[1], y.shape[2] // 2, 2).max(axis=-1)   # maxpool1
    y = jax.lax.conv_general_dilated(y, w2, (1,), "VALID",
                                     dimension_numbers=("NCH", "OIH", "NCH"),
                                     precision=hi) + b2[None, :, None]
    y = y[:, :, :(y.shape[2] // 2) * 2]
    y = y.reshape(B, y.shape[1], y.shape[2] // 2, 2).max(axis=-1)   # maxpool2
    feat = y.reshape(B, -1)
    feat = jnp.concatenate([feat, x2], axis=1)
    return jnp.dot(feat, wfc.T, precision=hi) + bfc[None, :]


if __name__ == "__main__":
    B, D_in, H, p = 2, 38, 32, 4   # D_in=38 => 3*6=18 conv features, matching fc = Linear(18 + p, 1)
    NFLAT = 18

    key = jax.random.PRNGKey(0)
    ks = jax.random.split(key, 8)
    x1 = jax.random.normal(ks[0], (B, D_in), jnp.float32)
    x2 = jax.random.normal(ks[1], (B, p), jnp.float32)
    w1 = jax.random.normal(ks[2], (H, 1, K1), jnp.float32) * 0.3
    b1 = jax.random.normal(ks[3], (H,), jnp.float32) * 0.1
    w2 = jax.random.normal(ks[4], (C2, H, K2), jnp.float32) * 0.1
    b2 = jax.random.normal(ks[5], (C2,), jnp.float32) * 0.1
    wfc = jax.random.normal(ks[6], (1, NFLAT + p), jnp.float32) * 0.1
    bfc = jax.random.normal(ks[7], (1,), jnp.float32) * 0.1

    out = jax.block_until_ready(cnn_forward(x1, x2, w1, b1, w2, b2, wfc, bfc))
    ref = jax.block_until_ready(reference(x1, x2, w1, b1, w2, b2, wfc, bfc))

    # bf16 operands / f32 accumulation in the kernel vs. an f32 HIGHEST reference
    np.testing.assert_allclose(np.asarray(out), np.asarray(ref), rtol=2e-2, atol=2e-2)
    assert out.shape == (B, 1)
    print("KERNEL_OK")
</pallas_src>

<mosaic_0001>
module attributes {stable_mosaic.version = 11 : i64} {
  func.func @cnn_kernel(%arg0: i32, %arg1: memref<8x38xf32, #tpu.memory_space<vmem>>, %arg2: memref<8x4xf32, #tpu.memory_space<vmem>>, %arg3: memref<38x1024xbf16, #tpu.memory_space<vmem>>, %arg4: memref<1x512xf32, #tpu.memory_space<vmem>>, %arg5: memref<512x36xbf16, #tpu.memory_space<vmem>>, %arg6: memref<1x18xf32, #tpu.memory_space<vmem>>, %arg7: memref<18x1xbf16, #tpu.memory_space<vmem>>, %arg8: memref<4x1xbf16, #tpu.memory_space<vmem>>, %arg9: memref<1x1xf32, #tpu.memory_space<vmem>>, %arg10: memref<8x1xf32, #tpu.memory_space<vmem>>) attributes {dimension_semantics = [#tpu.dimension_semantics<parallel>], iteration_bounds = array<i64: 1>, scalar_prefetch = 0 : i64, scratch_operands = 0 : i64, tpu.core_type = #tpu.core_type<tc>, window_params = [{transform_indices = @transform_0, window_bounds = array<i64: 8, 38>}, {transform_indices = @transform_1, window_bounds = array<i64: 8, 4>}, {pipeline_mode = #tpu.pipeline_mode<synchronous>, transform_indices = @transform_2, window_bounds = array<i64: 38, 1024>}, {pipeline_mode = #tpu.pipeline_mode<synchronous>, transform_indices = @transform_3, window_bounds = array<i64: 1, 512>}, {pipeline_mode = #tpu.pipeline_mode<synchronous>, transform_indices = @transform_4, window_bounds = array<i64: 512, 36>}, {pipeline_mode = #tpu.pipeline_mode<synchronous>, transform_indices = @transform_5, window_bounds = array<i64: 1, 18>}, {pipeline_mode = #tpu.pipeline_mode<synchronous>, transform_indices = @transform_6, window_bounds = array<i64: 18, 1>}, {pipeline_mode = #tpu.pipeline_mode<synchronous>, transform_indices = @transform_7, window_bounds = array<i64: 4, 1>}, {pipeline_mode = #tpu.pipeline_mode<synchronous>, transform_indices = @transform_8, window_bounds = array<i64: 1, 1>}, {transform_indices = @transform_9, window_bounds = array<i64: 8, 1>}]} {
    %c0 = arith.constant 0 : index
    %c0_0 = arith.constant 0 : index
    %0 = vector.load %arg1[%c0, %c0_0] : memref<8x38xf32, #tpu.memory_space<vmem>>, vector<8x38xf32>
    %1 = arith.truncf %0 : vector<8x38xf32> to vector<8x38xbf16>
    %c0_1 = arith.constant 0 : index
    %c0_2 = arith.constant 0 : index
    %2 = vector.load %arg3[%c0_1, %c0_2] : memref<38x1024xbf16, #tpu.memory_space<vmem>>, vector<38x1024xbf16>
    %cst = arith.constant dense<0.000000e+00> : vector<8x1024xf32>
    %3 = tpu.matmul %1, %2, %cst {dimension_numbers = #tpu.dot_dimension_numbers<[1], [0], [0], [1], [0, 0, 1, 1], [], []>} : vector<8x38xbf16>, vector<38x1024xbf16>, vector<8x1024xf32> -> vector<8x1024xf32>
    %4 = vector.extract_strided_slice %3 {offsets = [0, 0], sizes = [8, 512], strides = [1, 1]} : vector<8x1024xf32> to vector<8x512xf32>
    %5 = vector.extract_strided_slice %3 {offsets = [0, 512], sizes = [8, 512], strides = [1, 1]} : vector<8x1024xf32> to vector<8x512xf32>
    %6 = arith.maximumf %4, %5 : vector<8x512xf32>
    %c0_3 = arith.constant 0 : index
    %c0_4 = arith.constant 0 : index
    %7 = vector.load %arg4[%c0_3, %c0_4] : memref<1x512xf32, #tpu.memory_space<vmem>>, vector<1x512xf32>
    %8 = vector.broadcast %7 : vector<1x512xf32> to vector<8x512xf32>
    %9 = arith.addf %6, %8 : vector<8x512xf32>
    %10 = arith.truncf %9 : vector<8x512xf32> to vector<8x512xbf16>
    %c0_5 = arith.constant 0 : index
    %c0_6 = arith.constant 0 : index
    %11 = vector.load %arg5[%c0_5, %c0_6] : memref<512x36xbf16, #tpu.memory_space<vmem>>, vector<512x36xbf16>
    %cst_7 = arith.constant dense<0.000000e+00> : vector<8x36xf32>
    %12 = tpu.matmul %10, %11, %cst_7 {dimension_numbers = #tpu.dot_dimension_numbers<[1], [0], [0], [1], [0, 0, 1, 1], [], []>} : vector<8x512xbf16>, vector<512x36xbf16>, vector<8x36xf32> -> vector<8x36xf32>
    %13 = vector.extract_strided_slice %12 {offsets = [0, 0], sizes = [8, 18], strides = [1, 1]} : vector<8x36xf32> to vector<8x18xf32>
    %14 = vector.extract_strided_slice %12 {offsets = [0, 18], sizes = [8, 18], strides = [1, 1]} : vector<8x36xf32> to vector<8x18xf32>
    %15 = arith.maximumf %13, %14 : vector<8x18xf32>
    %c0_8 = arith.constant 0 : index
    %c0_9 = arith.constant 0 : index
    %16 = vector.load %arg6[%c0_8, %c0_9] : memref<1x18xf32, #tpu.memory_space<vmem>>, vector<1x18xf32>
    %17 = vector.broadcast %16 : vector<1x18xf32> to vector<8x18xf32>
    %18 = arith.addf %15, %17 : vector<8x18xf32>
    %19 = arith.truncf %18 : vector<8x18xf32> to vector<8x18xbf16>
    %c0_10 = arith.constant 0 : index
    %c0_11 = arith.constant 0 : index
    %20 = vector.load %arg7[%c0_10, %c0_11] : memref<18x1xbf16, #tpu.memory_space<vmem>>, vector<18x1xbf16>
    %cst_12 = arith.constant dense<0.000000e+00> : vector<8x1xf32>
    %21 = tpu.matmul %19, %20, %cst_12 {dimension_numbers = #tpu.dot_dimension_numbers<[1], [0], [0], [1], [0, 0, 1, 1], [], []>} : vector<8x18xbf16>, vector<18x1xbf16>, vector<8x1xf32> -> vector<8x1xf32>
    %c0_13 = arith.constant 0 : index
    %c0_14 = arith.constant 0 : index
    %22 = vector.load %arg2[%c0_13, %c0_14] : memref<8x4xf32, #tpu.memory_space<vmem>>, vector<8x4xf32>
    %23 = arith.truncf %22 : vector<8x4xf32> to vector<8x4xbf16>
    %c0_15 = arith.constant 0 : index
    %c0_16 = arith.constant 0 : index
    %24 = vector.load %arg8[%c0_15, %c0_16] : memref<4x1xbf16, #tpu.memory_space<vmem>>, vector<4x1xbf16>
    %cst_17 = arith.constant dense<0.000000e+00> : vector<8x1xf32>
    %25 = tpu.matmul %23, %24, %cst_17 {dimension_numbers = #tpu.dot_dimension_numbers<[1], [0], [0], [1], [0, 0, 1, 1], [], []>} : vector<8x4xbf16>, vector<4x1xbf16>, vector<8x1xf32> -> vector<8x1xf32>
    %26 = arith.addf %21, %25 : vector<8x1xf32>
    %c0_18 = arith.constant 0 : index
    %c0_19 = arith.constant 0 : index
    %27 = vector.load %arg9[%c0_18, %c0_19] : memref<1x1xf32, #tpu.memory_space<vmem>>, vector<1x1xf32>
    %28 = vector.broadcast %27 : vector<1x1xf32> to vector<8x1xf32>
    %29 = arith.addf %26, %28 : vector<8x1xf32>
    %c0_20 = arith.constant 0 : index
    %c0_21 = arith.constant 0 : index
    %30 = vector.load %arg10[%c0_20, %c0_21] : memref<8x1xf32, #tpu.memory_space<vmem>>, vector<8x1xf32>
    tpu.vector_store %arg10[%c0_20, %c0_21], %29 {strides = array<i32>} : memref<8x1xf32, #tpu.memory_space<vmem>>, vector<8x1xf32>,
    return
  }
  func.func @transform_0(%arg0: i32) -> (i32, i32) {
    %c0_i32 = arith.constant 0 : i32
    %c0_i32_0 = arith.constant 0 : i32
    return %arg0, %c0_i32 : i32, i32
  }
  func.func @transform_1(%arg0: i32) -> (i32, i32) {
    %c0_i32 = arith.constant 0 : i32
    %c0_i32_0 = arith.constant 0 : i32
    return %arg0, %c0_i32 : i32, i32
  }
  func.func @transform_2(%arg0: i32) -> (i32, i32) {
    %c0_i32 = arith.constant 0 : i32
    %c0_i32_0 = arith.constant 0 : i32
    %c0_i32_1 = arith.constant 0 : i32
    return %c0_i32, %c0_i32_0 : i32, i32
  }
  func.func @transform_3(%arg0: i32) -> (i32, i32) {
    %c0_i32 = arith.constant 0 : i32
    %c0_i32_0 = arith.constant 0 : i32
    %c0_i32_1 = arith.constant 0 : i32
    return %c0_i32, %c0_i32_0 : i32, i32
  }
  func.func @transform_4(%arg0: i32) -> (i32, i32) {
    %c0_i32 = arith.constant 0 : i32
    %c0_i32_0 = arith.constant 0 : i32
    %c0_i32_1 = arith.constant 0 : i32
    return %c0_i32, %c0_i32_0 : i32, i32
  }
  func.func @transform_5(%arg0: i32) -> (i32, i32) {
    %c0_i32 = arith.constant 0 : i32
    %c0_i32_0 = arith.constant 0 : i32
    %c0_i32_1 = arith.constant 0 : i32
    return %c0_i32, %c0_i32_0 : i32, i32
  }
  func.func @transform_6(%arg0: i32) -> (i32, i32) {
    %c0_i32 = arith.constant 0 : i32
    %c0_i32_0 = arith.constant 0 : i32
    %c0_i32_1 = arith.constant 0 : i32
    return %c0_i32, %c0_i32_0 : i32, i32
  }
  func.func @transform_7(%arg0: i32) -> (i32, i32) {
    %c0_i32 = arith.constant 0 : i32
    %c0_i32_0 = arith.constant 0 : i32
    %c0_i32_1 = arith.constant 0 : i32
    return %c0_i32, %c0_i32_0 : i32, i32
  }
  func.func @transform_8(%arg0: i32) -> (i32, i32) {
    %c0_i32 = arith.constant 0 : i32
    %c0_i32_0 = arith.constant 0 : i32
    %c0_i32_1 = arith.constant 0 : i32
    return %c0_i32, %c0_i32_0 : i32, i32
  }
  func.func @transform_9(%arg0: i32) -> (i32, i32) {
    %c0_i32 = arith.constant 0 : i32
    %c0_i32_0 = arith.constant 0 : i32
    return %arg0, %c0_i32 : i32, i32
  }
}

</mosaic_0001>

<llo_original>
// kernel: tile.8
$region0: #{tile.8}
  #allocation0 [shape = 's32[1]{0}', space=sflag, size = 0x4, scoped, tag = 'scoped memory for tile.8']
  %s0 = inlined_call_operand.vmem [shape: f32[32], index: 0, kind: input, shape index: {}]
  %s1 = inlined_call_operand.vmem [shape: f32[16,32], index: 1, kind: output, shape index: {}]
  // Predicated region
  $region2: #{tile.8} parent=0 // pred_check
    _
  $region3: #{tile.8} parent=0 // pred_check_branch
    %3 = sbr.rel (0) target = $region5
  $region4: #{tile.8} parent=0 // pred_region
    _
  $region5: #{tile.8} parent=0 // pred_fallthru
    _
  %v4 = vld [vmem:[%s0] ss:$0 sm:$0xff]
  %5 = vst [vmem:[%s1] sm:$0xff] %v4
  %s6 = scalar_lea.vmem %s1, 8
  %7 = vst [vmem:[%s6] sm:$0xff] %v4

// kernel: tile.9
$region0: #{tile.9}
  %s0 = inlined_call_operand.vmem [shape: f32[16,32], index: 0, kind: input, shape index: {}]
  %s1 = inlined_call_operand.vmem [shape: f32[1,512], index: 1, kind: output, shape index: {}]
  $region1: #{tile.9} parent=0
    #allocation0 [shape = 'u8[16384]{0}', space=vmem, size = 0x4000, scoped, tag = 'scoped mem for output reshape']
    %v2 = vld [vmem:[%s0] ss:$4 sm:$0xf]
    %vm3 = vcmask 261120
    %4 = vst.msk [vmem:[#allocation0] ss:$8 sm:$0xf] %vm3, %v2
    %s5 = scalar_lea.vmem %s0, 3
    %v6 = vld [vmem:[%s5] ss:$4 sm:$0xf]
    %7 = vrot.lane.b32.xlu0 %v6, 96
    %v8 = vpop.permute.xlu0 %7
    %vm9 = vcmask 1048320
    %10 = vst.msk [vmem:[#allocation0] ss:$8 sm:$0xf] %vm9, %v8
    %s11 = scalar_lea.vmem %s0, 2
    %v12 = vld [vmem:[%s11] ss:$4 sm:$0xf]
    %13 = vrot.lane.b32.xlu0 %v12, 64
    %v14 = vpop.permute.xlu0 %13
    %vm15 = vcmask 785920
    %16 = vst.msk [vmem:[#allocation0] ss:$8 sm:$0xf] %vm15, %v14
    %s17 = scalar_lea.vmem %s0, 1
    %v18 = vld [vmem:[%s17] ss:$4 sm:$0xf]
    %19 = vrot.lane.b32.xlu0 %v18, 32
    %v20 = vpop.permute.xlu0 %19
    %vm21 = vcmask 523520
    %22 = vst.msk [vmem:[#allocation0] ss:$8 sm:$0xf] %vm21, %v20
    %s24 = sshll.u32 1, 1
    %s25 = ssub.s32 %s24, 1
    %v27 = vld [vmem:[#allocation0] sm:%s25]
    %s28 = sshll.u32 1, 1
    %s29 = ssub.s32 %s28, 1
    %30 = vst [vmem:[%s1] sm:%s29] %v27
    %s31 = scalar_lea.vmem [#allocation0], 8
    %v32 = vld [vmem:[%s31] sm:%s25]
    %s33 = sshll.u32 1, 1
    %s34 = ssub.s32 %s33, 1
    %s35 = scalar_lea.vmem %s1, 1
    %36 = vst [vmem:[%s35] sm:%s34] %v32
    %s37 = scalar_lea.vmem [#allocation0], 16
    %v38 = vld [vmem:[%s37] sm:%s25]
    %s39 = sshll.u32 1, 1
    %s40 = ssub.s32 %s39, 1
    %s41 = smul.addr 1, 2
    %s42 = scalar_lea.vmem %s1, %s41
    %43 = vst [vmem:[%s42] sm:%s40] %v38
    %s44 = scalar_lea.vmem [#allocation0], 24
    %v45 = vld [vmem:[%s44] sm:%s25]
    %s46 = sshll.u32 1, 1
    %s47 = ssub.s32 %s46, 1
    %s48 = smul.addr 1, 3
    %s49 = scalar_lea.vmem %s1, %s48
    %50 = vst [vmem:[%s49] sm:%s47] %v45

// kernel: cnn_forward.1
$region0: #{cnn_forward.1}
  #allocation0 [shape = 'u32[]', space=smem, size = 0x4, offset = 0x4, fixed_abs, tag = 'smem constant byte address 0x4 - core index']
  #allocation1 [shape = 'u32[144,128]{1,0:T(1,128)}', space=vmem, size = 0x12000, scoped, tag = 'internal scratch']
  #allocation2 [shape = 'f32[1,1]{1,0:T(1,128)S(1)}', space=vmem, size = 0x200, scoped, tag = 'scoped memory for cnn_forward.1']
  %s0 = inlined_call_operand.vmem [shape: f32[8,38], index: 0, kind: input, shape index: {}]
  %s1 = inlined_call_operand.vmem [shape: f32[8,4], index: 1, kind: input, shape index: {}]
  %s2 = inlined_call_operand.vmem [shape: bf16[38,1024], index: 2, kind: input, shape index: {}]
  %s3 = inlined_call_operand.vmem [shape: f32[1,512], index: 3, kind: input, shape index: {}]
  %s4 = inlined_call_operand.vmem [shape: bf16[512,36], index: 4, kind: input, shape index: {}]
  %s5 = inlined_call_operand.vmem [shape: f32[1,18], index: 5, kind: input, shape index: {}]
  %s6 = inlined_call_operand.vmem [shape: bf16[18,1], index: 6, kind: input, shape index: {}]
  %s7 = inlined_call_operand.vmem [shape: bf16[4,1], index: 7, kind: input, shape index: {}]
  %s8 = inlined_call_operand.<no memory space> [shape: f32[1,1], index: 8, kind: input, shape index: {}]
  %s9 = inlined_call_operand.vmem [shape: f32[8,1], index: 9, kind: output, shape index: {}]
  %s10 = sld [smem:[#allocation0]]
  $region46: #{cnn_forward.1} parent=0
    _
  %s12 = ssub.s32 1, %s10
  %s13 = scalar_select 0, %s12, %s10
  %v14 = vstv %s8
  %15 = vst [vmem:[#allocation2] sm:$0x1] %v14
  // Predicated region
  $region2: #{cnn_forward.1} parent=0 // pred_check
    _
  $region3: #{cnn_forward.1} parent=0 // pred_check_branch
    %17 = sbr.rel (0) target = $region5
  $region4: #{cnn_forward.1} parent=0 // pred_region
    _
  $region5: #{cnn_forward.1} parent=0 // pred_fallthru
    _
  // Predicated region
  $region6: #{cnn_forward.1} parent=0 // pred_check
    _
  $region7: #{cnn_forward.1} parent=0 // pred_check_branch
    %19 = sbr.rel (0) target = $region9
  $region8: #{cnn_forward.1} parent=0 // pred_region
    _
  $region9: #{cnn_forward.1} parent=0 // pred_fallthru
    _
  // Predicated region
  $region10: #{cnn_forward.1} parent=0 // pred_check
    _
  $region11: #{cnn_forward.1} parent=0 // pred_check_branch
    %21 = sbr.rel (0) target = $region13
  $region12: #{cnn_forward.1} parent=0 // pred_region
    _
  $region13: #{cnn_forward.1} parent=0 // pred_fallthru
    _
  // Predicated region
  $region14: #{cnn_forward.1} parent=0 // pred_check
    _
  $region15: #{cnn_forward.1} parent=0 // pred_check_branch
    %23 = sbr.rel (0) target = $region17
  $region16: #{cnn_forward.1} parent=0 // pred_region
    _
  $region17: #{cnn_forward.1} parent=0 // pred_fallthru
    _
  // Predicated region
  $region18: #{cnn_forward.1} parent=0 // pred_check
    _
  $region19: #{cnn_forward.1} parent=0 // pred_check_branch
    %25 = sbr.rel (0) target = $region21
  $region20: #{cnn_forward.1} parent=0 // pred_region
    _
  $region21: #{cnn_forward.1} parent=0 // pred_fallthru
    _
  // Predicated region
  $region22: #{cnn_forward.1} parent=0 // pred_check
    _
  $region23: #{cnn_forward.1} parent=0 // pred_check_branch
    %27 = sbr.rel (0) target = $region25
  $region24: #{cnn_forward.1} parent=0 // pred_region
    _
  $region25: #{cnn_forward.1} parent=0 // pred_fallthru
    _
  // Predicated region
  $region26: #{cnn_forward.1} parent=0 // pred_check
    _
  $region27: #{cnn_forward.1} parent=0 // pred_check_branch
    %29 = sbr.rel (0) target = $region29
  $region28: #{cnn_forward.1} parent=0 // pred_region
    _
  $region29: #{cnn_forward.1} parent=0 // pred_fallthru
    _
  // Predicated region
  $region30: #{cnn_forward.1} parent=0 // pred_check
    _
  $region31: #{cnn_forward.1} parent=0 // pred_check_branch
    %31 = sbr.rel (0) target = $region33
  $region32: #{cnn_forward.1} parent=0 // pred_region
    _
  $region33: #{cnn_forward.1} parent=0 // pred_fallthru
    _
  // Predicated region
  $region34: #{cnn_forward.1} parent=0 // pred_check
    _
  $region35: #{cnn_forward.1} parent=0 // pred_check_branch
    %33 = sbr.rel (0) target = $region37
  $region36: #{cnn_forward.1} parent=0 // pred_region
    _
  $region37: #{cnn_forward.1} parent=0 // pred_fallthru
    _
  %v35 = vld [vmem:[%s0] sm:$0xff]
  %v36 = vpack.c.bf16 %v35, %v35
  %v37 = vld [vmem:[%s2] sm:$0xff]
  %v38 = vld [vmem:[%s2 + $0x8] sm:$0xff]
  %v39 = vld [vmem:[%s2 + $0x10] sm:$0xff]
  %v40 = vld [vmem:[%s2 + $0x18] sm:$0xff]
  %v41 = vld [vmem:[%s2 + $0x20] sm:$0xff]
  %v42 = vld [vmem:[%s2 + $0x28] sm:$0xff]
  %v43 = vld [vmem:[%s2 + $0x30] sm:$0xff]
  %v44 = vld [vmem:[%s2 + $0x38] sm:$0xff]
  %v45 = vld [vmem:[%s2 + $0x40] sm:$0xff]
  %v46 = vld [vmem:[%s2 + $0x48] sm:$0xff]
  %v47 = vld [vmem:[%s2 + $0x50] sm:$0xff]
  %v48 = vld [vmem:[%s2 + $0x58] sm:$0xff]
  %v49 = vld [vmem:[%s2 + $0x60] sm:$0xff]
  %v50 = vld [vmem:[%s2 + $0x68] sm:$0xff]
  %v51 = vld [vmem:[%s2 + $0x70] sm:$0xff]
  %v52 = vld [vmem:[%s2 + $0x78] sm:$0xff]
  %v53 = vld [vmem:[%s2 + $0x80] sm:$0x77]
  %v54 = vld [vmem:[%s2 + $0x88] sm:$0x77]
  %v55 = vld [vmem:[%s2 + $0x90] sm:$0x77]
  %v56 = vld [vmem:[%s2 + $0x98] sm:$0x77]
  %v77 = vunpack.c.l.b16 %v37
  %v78 = vunpack.c.h.b16 %v37
  %v79 = vunpack.c.l.b16 %v38
  %v80 = vunpack.c.h.b16 %v38
  %v81 = vunpack.c.l.b16 %v39
  %v82 = vunpack.c.h.b16 %v39
  %v83 = vunpack.c.l.b16 %v40
  %v84 = vunpack.c.h.b16 %v40
  %v85 = vunpack.c.l.b16 %v41
  %v86 = vunpack.c.h.b16 %v41
  %v87 = vunpack.c.l.b16 %v42
  %v88 = vunpack.c.h.b16 %v42
  %v89 = vunpack.c.l.b16 %v43
  %v90 = vunpack.c.h.b16 %v43
  %v91 = vunpack.c.l.b16 %v44
  %v92 = vunpack.c.h.b16 %v44
  %v93 = vunpack.c.l.b16 %v45
  %v94 = vunpack.c.h.b16 %v45
  %v95 = vunpack.c.l.b16 %v46
  %v96 = vunpack.c.h.b16 %v46
  %v97 = vunpack.c.l.b16 %v47
  %v98 = vunpack.c.h.b16 %v47
  %v99 = vunpack.c.l.b16 %v48
  %v100 = vunpack.c.h.b16 %v48
  %v101 = vunpack.c.l.b16 %v49
  %v102 = vunpack.c.h.b16 %v49
  %v103 = vunpack.c.l.b16 %v50
  %v104 = vunpack.c.h.b16 %v50
  %v105 = vunpack.c.l.b16 %v51
  %v106 = vunpack.c.h.b16 %v51
  %v107 = vunpack.c.l.b16 %v52
  %v108 = vunpack.c.h.b16 %v52
  %v109 = vunpack.c.l.b16 %v53
  %v110 = vunpack.c.h.b16 %v53
  %v111 = vunpack.c.l.b16 %v54
  %v112 = vunpack.c.h.b16 %v54
  %v113 = vunpack.c.l.b16 %v55
  %v114 = vunpack.c.h.b16 %v55
  %v115 = vunpack.c.l.b16 %v56
  %v116 = vunpack.c.h.b16 %v56
  %v117 = vpack.c.b16 %v85, %v77
  %v118 = vpack.c.b16 %v86, %v78
  %v119 = vpack.c.b16 %v87, %v79
  %v120 = vpack.c.b16 %v88, %v80
  %v121 = vpack.c.b16 %v89, %v81
  %v122 = vpack.c.b16 %v90, %v82
  %v123 = vpack.c.b16 %v91, %v83
  %v124 = vpack.c.b16 %v92, %v84
  %v125 = vpack.c.b16 %v101, %v93
  %v126 = vpack.c.b16 %v102, %v94
  %v127 = vpack.c.b16 %v103, %v95
  %v128 = vpack.c.b16 %v104, %v96
  %v129 = vpack.c.b16 %v105, %v97
  %v130 = vpack.c.b16 %v106, %v98
  %v131 = vpack.c.b16 %v107, %v99
  %v132 = vpack.c.b16 %v108, %v100
  %v133 = vpack.c.b16 %v109, %v109
  %v134 = vpack.c.b16 %v110, %v110
  %v135 = vpack.c.b16 %v111, %v111
  %v136 = vpack.c.b16 %v112, %v112
  %v137 = vpack.c.b16 %v113, %v113
  %v138 = vpack.c.b16 %v114, %v114
  %v139 = vpack.c.b16 %v115, %v115
  %v140 = vpack.c.b16 %v116, %v116
  %vm157 = vcmask 310272
  %v159 = vsel %vm157, %v36, 0
  %vm161 = vcmask 1042432
  %v163 = vsel %vm161, %v133, 0
  %v166 = vsel %vm161, %v134, 0
  %v169 = vsel %vm161, %v135, 0
  %v172 = vsel %vm161, %v136, 0
  %v175 = vsel %vm161, %v137, 0
  %v178 = vsel %vm161, %v138, 0
  %v181 = vsel %vm161, %v139, 0
  %v184 = vsel %vm161, %v140, 0
  %186 = vmatprep.subr.bf16.mxu0 0
  %187 = vmatpush1.bf16.msra.mxu0 0
  %188 = vmatprep.subr.bf16.mxu0 0
  %189 = vmatpush1.bf16.msra.mxu0 0
  %190 = vmatprep.subr.bf16.mxu0 0
  %191 = vmatpush1.bf16.msra.mxu0 0
  %192 = vmatprep.subr.bf16.mxu0 0
  %193 = vmatpush1.bf16.msra.mxu0 0
  %194 = vmatprep.subr.bf16.mxu0 0
  %195 = vmatpush1.bf16.msra.mxu0 0
  %196 = vmatprep.subr.bf16.mxu0 %v166
  %197 = vmatpush1.bf16.msra.mxu0 %v163
  %198 = vmatprep.subr.bf16.mxu0 %v126
  %199 = vmatpush1.bf16.msra.mxu0 %v125
  %200 = vmatprep.subr.bf16.mxu0 %v118
  %201 = vmatpush1.bf16.msra.mxu0 %v117
  %202 = vmatprep.subr.bf16.mxu0 0
  %203 = vmatpush2.bf16.msra.mxu0 0
  %204 = vmatprep.subr.bf16.mxu0 0
  %205 = vmatpush2.bf16.msra.mxu0 0
  %206 = vmatprep.subr.bf16.mxu0 0
  %207 = vmatpush2.bf16.msra.mxu0 0
  %208 = vmatprep.subr.bf16.mxu0 0
  %209 = vmatpush2.bf16.msra.mxu0 0
  %210 = vmatprep.subr.bf16.mxu0 0
  %211 = vmatpush2.bf16.msra.mxu0 0
  %212 = vmatprep.subr.bf16.mxu0 0
  %213 = vmatpush2.bf16.msra.mxu0 0
  %214 = vmatprep.subr.bf16.mxu0 0
  %215 = vmatpush2.bf16.msra.mxu0 0
  %216 = vmatprep.subr.bf16.mxu0 0
  %217 = vmatpush2.bf16.msra.mxu0 0
  %218 = vmatprep.mubr.bf16.mxu0 0
  %219 = vmatmul.mubr.bf16.gmra.mxu0 %v159
  %v220 = vpop.f32.mrf.mxu0
  %v221 = vadd.f32 0.0, %v220
  %v222 = vpop.f32.mrf.mxu0
  %v223 = vadd.f32 0.0, %v222
  %v224 = vpop.f32.mrf.mxu0
  %v225 = vpop.f32.mrf.mxu0
  %226 = vdwg.mxu0
  %227 = vmatprep.subr.bf16.mxu0 0
  %228 = vmatpush1.bf16.msra.mxu0 0
  %229 = vmatprep.subr.bf16.mxu0 0
  %230 = vmatpush1.bf16.msra.mxu0 0
  %231 = vmatprep.subr.bf16.mxu0 0
  %232 = vmatpush1.bf16.msra.mxu0 0
  %233 = vmatprep.subr.bf16.mxu0 0
  %234 = vmatpush1.bf16.msra.mxu0 0
  %235 = vmatprep.subr.bf16.mxu0 0
  %236 = vmatpush1.bf16.msra.mxu0 0
  %237 = vmatprep.subr.bf16.mxu0 %v172
  %238 = vmatpush1.bf16.msra.mxu0 %v169
  %239 = vmatprep.subr.bf16.mxu0 %v128
  %240 = vmatpush1.bf16.msra.mxu0 %v127
  %241 = vmatprep.subr.bf16.mxu0 %v120
  %242 = vmatpush1.bf16.msra.mxu0 %v119
  %243 = vmatprep.subr.bf16.mxu0 0
  %244 = vmatpush2.bf16.msra.mxu0 0
  %245 = vmatprep.subr.bf16.mxu0 0
  %246 = vmatpush2.bf16.msra.mxu0 0
  %247 = vmatprep.subr.bf16.mxu0 0
  %248 = vmatpush2.bf16.msra.mxu0 0
  %249 = vmatprep.subr.bf16.mxu0 0
  %250 = vmatpush2.bf16.msra.mxu0 0
  %251 = vmatprep.subr.bf16.mxu0 0
  %252 = vmatpush2.bf16.msra.mxu0 0
  %253 = vmatprep.subr.bf16.mxu0 0
  %254 = vmatpush2.bf16.msra.mxu0 0
  %255 = vmatprep.subr.bf16.mxu0 0
  %256 = vmatpush2.bf16.msra.mxu0 0
  %257 = vmatprep.subr.bf16.mxu0 0
  %258 = vmatpush2.bf16.msra.mxu0 0
  %259 = vmatprep.mubr.bf16.mxu0 0
  %260 = vmatmul.mubr.bf16.gmra.mxu0 %v159
  %v261 = vpop.f32.mrf.mxu0
  %v262 = vadd.f32 0.0, %v261
  %v263 = vpop.f32.mrf.mxu0
  %v264 = vadd.f32 0.0, %v263
  %v265 = vpop.f32.mrf.mxu0
  %v266 = vpop.f32.mrf.mxu0
  %267 = vdwg.mxu0
  %268 = vmatprep.subr.bf16.mxu0 0
  %269 = vmatpush1.bf16.msra.mxu0 0
  %270 = vmatprep.subr.bf16.mxu0 0
  %271 = vmatpush1.bf16.msra.mxu0 0
  %272 = vmatprep.subr.bf16.mxu0 0
  %273 = vmatpush1.bf16.msra.mxu0 0
  %274 = vmatprep.subr.bf16.mxu0 0
  %275 = vmatpush1.bf16.msra.mxu0 0
  %276 = vmatprep.subr.bf16.mxu0 0
  %277 = vmatpush1.bf16.msra.mxu0 0
  %278 = vmatprep.subr.bf16.mxu0 %v178
  %279 = vmatpush1.bf16.msra.mxu0 %v175
  %280 = vmatprep.subr.bf16.mxu0 %v130
  %281 = vmatpush1.bf16.msra.mxu0 %v129
  %282 = vmatprep.subr.bf16.mxu0 %v122
  %283 = vmatpush1.bf16.msra.mxu0 %v121
  %284 = vmatprep.subr.bf16.mxu0 0
  %285 = vmatpush2.bf16.msra.mxu0 0
  %286 = vmatprep.subr.bf16.mxu0 0
  %287 = vmatpush2.bf16.msra.mxu0 0
  %288 = vmatprep.subr.bf16.mxu0 0
  %289 = vmatpush2.bf16.msra.mxu0 0
  %290 = vmatprep.subr.bf16.mxu0 0
  %291 = vmatpush2.bf16.msra.mxu0 0
  %292 = vmatprep.subr.bf16.mxu0 0
  %293 = vmatpush2.bf16.msra.mxu0 0
  %294 = vmatprep.subr.bf16.mxu0 0
  %295 = vmatpush2.bf16.msra.mxu0 0
  %296 = vmatprep.subr.bf16.mxu0 0
  %297 = vmatpush2.bf16.msra.mxu0 0
  %298 = vmatprep.subr.bf16.mxu0 0
  %299 = vmatpush2.bf16.msra.mxu0 0
  %300 = vmatprep.mubr.bf16.mxu0 0
  %301 = vmatmul.mubr.bf16.gmra.mxu0 %v159
  %v302 = vpop.f32.mrf.mxu0
  %v303 = vadd.f32 0.0, %v302
  %v304 = vpop.f32.mrf.mxu0
  %v305 = vadd.f32 0.0, %v304
  %v306 = vpop.f32.mrf.mxu0
  %v307 = vpop.f32.mrf.mxu0
  %308 = vdwg.mxu0
  %309 = vmatprep.subr.bf16.mxu0 0
  %310 = vmatpush1.bf16.msra.mxu0 0
  %311 = vmatprep.subr.bf16.mxu0 0
  %312 = vmatpush1.bf16.msra.mxu0 0
  %313 = vmatprep.subr.bf16.mxu0 0
  %314 = vmatpush1.bf16.msra.mxu0 0
  %315 = vmatprep.subr.bf16.mxu0 0
  %316 = vmatpush1.bf16.msra.mxu0 0
  %317 = vmatprep.subr.bf16.mxu0 0
  %318 = vmatpush1.bf16.msra.mxu0 0
  %319 = vmatprep.subr.bf16.mxu0 %v184
  %320 = vmatpush1.bf16.msra.mxu0 %v181
  %321 = vmatprep.subr.bf16.mxu0 %v132
  %322 = vmatpush1.bf16.msra.mxu0 %v131
  %323 = vmatprep.subr.bf16.mxu0 %v124
  %324 = vmatpush1.bf16.msra.mxu0 %v123
  %325 = vmatprep.subr.bf16.mxu0 0
  %326 = vmatpush2.bf16.msra.mxu0 0
  %327 = vmatprep.subr.bf16.mxu0 0
  %328 = vmatpush2.bf16.msra.mxu0 0
  %329 = vmatprep.subr.bf16.mxu0 0
  %330 = vmatpush2.bf16.msra.mxu0 0
  %331 = vmatprep.subr.bf16.mxu0 0
  %332 = vmatpush2.bf16.msra.mxu0 0
  %333 = vmatprep.subr.bf16.mxu0 0
  %334 = vmatpush2.bf16.msra.mxu0 0
  %335 = vmatprep.subr.bf16.mxu0 0
  %336 = vmatpush2.bf16.msra.mxu0 0
  %337 = vmatprep.subr.bf16.mxu0 0
  %338 = vmatpush2.bf16.msra.mxu0 0
  %339 = vmatprep.subr.bf16.mxu0 0
  %340 = vmatpush2.bf16.msra.mxu0 0
  %341 = vmatprep.mubr.bf16.mxu0 0
  %342 = vmatmul.mubr.bf16.gmra.mxu0 %v159
  %v343 = vpop.f32.mrf.mxu0
  %v344 = vadd.f32 0.0, %v343
  %v345 = vpop.f32.mrf.mxu0
  %v346 = vadd.f32 0.0, %v345
  %v347 = vpop.f32.mrf.mxu0
  %v348 = vpop.f32.mrf.mxu0
  %349 = vdwg.mxu0
  %v350 = vmax.f32 %v221, %v303
  %v351 = vmax.f32 %v223, %v305
  %v352 = vmax.f32 %v262, %v344
  %v353 = vmax.f32 %v264, %v346
  %v354 = vld [vmem:[%s3] sm:$0xf]
  %v356 = vlaneseq
  %v357 = vshrl.u32 %v356, 7
  %v358 = vsub.s32 0, %v357
  %v359 = vrot.slane %v354, %v358
  %v360 = vlaneseq
  %v361 = vshrl.u32 %v360, 7
  %v362 = vsub.s32 1, %v361
  %v363 = vrot.slane %v354, %v362
  %v364 = vlaneseq
  %v365 = vshrl.u32 %v364, 7
  %v366 = vsub.s32 2, %v365
  %v367 = vrot.slane %v354, %v366
  %v368 = vlaneseq
  %v369 = vshrl.u32 %v368, 7
  %v370 = vsub.s32 3, %v369
  %v371 = vrot.slane %v354, %v370
  %v376 = vadd.f32 %v350, %v359
  %v377 = vadd.f32 %v351, %v363
  %v378 = vadd.f32 %v352, %v367
  %v379 = vadd.f32 %v353, %v371
  %v380 = vpack.c.bf16 %v376, %v376
  %v381 = vpack.c.bf16 %v377, %v377
  %v382 = vpack.c.bf16 %v378, %v378
  %v383 = vpack.c.bf16 %v379, %v379
  %v384 = vld [vmem:[%s4] sm:$0xf]
  %v385 = vld [vmem:[%s4 + $0x4] sm:$0xf]
  %v386 = vld [vmem:[%s4 + $0x8] sm:$0xf]
  %v387 = vld [vmem:[%s4 + $0xc] sm:$0xf]
  %v388 = vld [vmem:[%s4 + $0x10] sm:$0xf]
  %v389 = vld [vmem:[%s4 + $0x14] sm:$0xf]
  %v390 = vld [vmem:[%s4 + $0x18] sm:$0xf]
  %v391 = vld [vmem:[%s4 + $0x1c] sm:$0xf]
  %v392 = vld [vmem:[%s4 + $0x20] sm:$0xf]
  %v393 = vld [vmem:[%s4 + $0x24] sm:$0xf]
  %v394 = vld [vmem:[%s4 + $0x28] sm:$0xf]
  %v395 = vld [vmem:[%s4 + $0x2c] sm:$0xf]
  %v396 = vld [vmem:[%s4 + $0x30] sm:$0xf]
  %v397 = vld [vmem:[%s4 + $0x34] sm:$0xf]
  %v398 = vld [vmem:[%s4 + $0x38] sm:$0xf]
  %v399 = vld [vmem:[%s4 + $0x3c] sm:$0xf]
  %v400 = vld [vmem:[%s4 + $0x40] sm:$0xf]
  %v401 = vld [vmem:[%s4 + $0x44] sm:$0xf]
  %v402 = vld [vmem:[%s4 + $0x48] sm:$0xf]
  %v403 = vld [vmem:[%s4 + $0x4c] sm:$0xf]
  %v404 = vld [vmem:[%s4 + $0x50] sm:$0xf]
  %v405 = vld [vmem:[%s4 + $0x54] sm:$0xf]
  %v406 = vld [vmem:[%s4 + $0x58] sm:$0xf]
  %v407 = vld [vmem:[%s4 + $0x5c] sm:$0xf]
  %v408 = vld [vmem:[%s4 + $0x60] sm:$0xf]
  %v409 = vld [vmem:[%s4 + $0x64] sm:$0xf]
  %v410 = vld [vmem:[%s4 + $0x68] sm:$0xf]
  %v411 = vld [vmem:[%s4 + $0x6c] sm:$0xf]
  %v412 = vld [vmem:[%s4 + $0x70] sm:$0xf]
  %v413 = vld [vmem:[%s4 + $0x74] sm:$0xf]
  %v414 = vld [vmem:[%s4 + $0x78] sm:$0xf]
  %v415 = vld [vmem:[%s4 + $0x7c] sm:$0xf]
  %v416 = vld [vmem:[%s4 + $0x80] sm:$0xf]
  %v417 = vld [vmem:[%s4 + $0x84] sm:$0xf]
  %v418 = vld [vmem:[%s4 + $0x88] sm:$0xf]
  %v419 = vld [vmem:[%s4 + $0x8c] sm:$0xf]
  %v420 = vld [vmem:[%s4 + $0x90] sm:$0xf]
  %v421 = vld [vmem:[%s4 + $0x94] sm:$0xf]
  %v422 = vld [vmem:[%s4 + $0x98] sm:$0xf]
  %v423 = vld [vmem:[%s4 + $0x9c] sm:$0xf]
  %v424 = vld [vmem:[%s4 + $0xa0] sm:$0xf]
  %v425 = vld [vmem:[%s4 + $0xa4] sm:$0xf]
  %v426 = vld [vmem:[%s4 + $0xa8] sm:$0xf]
  %v427 = vld [vmem:[%s4 + $0xac] sm:$0xf]
  %v428 = vld [vmem:[%s4 + $0xb0] sm:$0xf]
  %v429 = vld [vmem:[%s4 + $0xb4] sm:$0xf]
  %v430 = vld [vmem:[%s4 + $0xb8] sm:$0xf]
  %v431 = vld [vmem:[%s4 + $0xbc] sm:$0xf]
  %v432 = vld [vmem:[%s4 + $0xc0] sm:$0xf]
  %v433 = vld [vmem:[%s4 + $0xc4] sm:$0xf]
  %v434 = vld [vmem:[%s4 + $0xc8] sm:$0xf]
  %v435 = vld [vmem:[%s4 + $0xcc] sm:$0xf]
  %v436 = vld [vmem:[%s4 + $0xd0] sm:$0xf]
  %v437 = vld [vmem:[%s4 + $0xd4] sm:$0xf]
  %v438 = vld [vmem:[%s4 + $0xd8] sm:$0xf]
  %v439 = vld [vmem:[%s4 + $0xdc] sm:$0xf]
  %v440 = vld [vmem:[%s4 + $0xe0] sm:$0xf]
  %v441 = vld [vmem:[%s4 + $0xe4] sm:$0xf]
  %v442 = vld [vmem:[%s4 + $0xe8] sm:$0xf]
  %v443 = vld [vmem:[%s4 + $0xec] sm:$0xf]
  %v444 = vld [vmem:[%s4 + $0xf0] sm:$0xf]
  %v445 = vld [vmem:[%s4 + $0xf4] sm:$0xf]
  %v446 = vld [vmem:[%s4 + $0xf8] sm:$0xf]
  %v447 = vld [vmem:[%s4 + $0xfc] sm:$0xf]
  %v512 = vunpack.c.l.b16 %v384
  %v513 = vunpack.c.l.b16 %v385
  %v514 = vunpack.c.l.b16 %v386
  %v515 = vunpack.c.l.b16 %v387
  %v516 = vunpack.c.l.b16 %v388
  %v517 = vunpack.c.l.b16 %v389
  %v518 = vunpack.c.l.b16 %v390
  %v519 = vunpack.c.l.b16 %v391
  %v520 = vunpack.c.l.b16 %v392
  %v521 = vunpack.c.l.b16 %v393
  %v522 = vunpack.c.l.b16 %v394
  %v523 = vunpack.c.l.b16 %v395
  %v524 = vunpack.c.l.b16 %v396
  %v525 = vunpack.c.l.b16 %v397
  %v526 = vunpack.c.l.b16 %v398
  %v527 = vunpack.c.l.b16 %v399
  %v528 = vunpack.c.l.b16 %v400
  %v529 = vunpack.c.l.b16 %v401
  %v530 = vunpack.c.l.b16 %v402
  %v531 = vunpack.c.l.b16 %v403
  %v532 = vunpack.c.l.b16 %v404
  %v533 = vunpack.c.l.b16 %v405
  %v534 = vunpack.c.l.b16 %v406
  %v535 = vunpack.c.l.b16 %v407
  %v536 = vunpack.c.l.b16 %v408
  %v537 = vunpack.c.l.b16 %v409
  %v538 = vunpack.c.l.b16 %v410
  %v539 = vunpack.c.l.b16 %v411
  %v540 = vunpack.c.l.b16 %v412
  %v541 = vunpack.c.l.b16 %v413
  %v542 = vunpack.c.l.b16 %v414
  %v543 = vunpack.c.l.b16 %v415
  %v544 = vunpack.c.l.b16 %v416
  %v545 = vunpack.c.l.b16 %v417
  %v546 = vunpack.c.l.b16 %v418
  %v547 = vunpack.c.l.b16 %v419
  %v548 = vunpack.c.l.b16 %v420
  %v549 = vunpack.c.l.b16 %v421
  %v550 = vunpack.c.l.b16 %v422
  %v551 = vunpack.c.l.b16 %v423
  %v552 = vunpack.c.l.b16 %v424
  %v553 = vunpack.c.l.b16 %v425
  %v554 = vunpack.c.l.b16 %v426
  %v555 = vunpack.c.l.b16 %v427
  %v556 = vunpack.c.l.b16 %v428
  %v557 = vunpack.c.l.b16 %v429
  %v558 = vunpack.c.l.b16 %v430
  %v559 = vunpack.c.l.b16 %v431
  %v560 = vunpack.c.l.b16 %v432
  %v561 = vunpack.c.l.b16 %v433
  %v562 = vunpack.c.l.b16 %v434
  %v563 = vunpack.c.l.b16 %v435
  %v564 = vunpack.c.l.b16 %v436
  %v565 = vunpack.c.l.b16 %v437
  %v566 = vunpack.c.l.b16 %v438
  %v567 = vunpack.c.l.b16 %v439
  %v568 = vunpack.c.l.b16 %v440
  %v569 = vunpack.c.l.b16 %v441
  %v570 = vunpack.c.l.b16 %v442
  %v571 = vunpack.c.l.b16 %v443
  %v572 = vunpack.c.l.b16 %v444
  %v573 = vunpack.c.l.b16 %v445
  %v574 = vunpack.c.l.b16 %v446
  %v575 = vunpack.c.l.b16 %v447
  %v576 = vpack.c.b16 %v513, %v512
  %v577 = vpack.c.b16 %v515, %v514
  %v578 = vpack.c.b16 %v517, %v516
  %v579 = vpack.c.b16 %v519, %v518
  %v580 = vpack.c.b16 %v521, %v520
  %v581 = vpack.c.b16 %v523, %v522
  %v582 = vpack.c.b16 %v525, %v524
  %v583 = vpack.c.b16 %v527, %v526
  %v584 = vpack.c.b16 %v529, %v528
  %v585 = vpack.c.b16 %v531, %v530
  %v586 = vpack.c.b16 %v533, %v532
  %v587 = vpack.c.b16 %v535, %v534
  %v588 = vpack.c.b16 %v537, %v536
  %v589 = vpack.c.b16 %v539, %v538
  %v590 = vpack.c.b16 %v541, %v540
  %v591 = vpack.c.b16 %v543, %v542
  %v592 = vpack.c.b16 %v545, %v544
  %v593 = vpack.c.b16 %v547, %v546
  %v594 = vpack.c.b16 %v549, %v548
  %v595 = vpack.c.b16 %v551, %v550
  %v596 = vpack.c.b16 %v553, %v552
  %v597 = vpack.c.b16 %v555, %v554
  %v598 = vpack.c.b16 %v557, %v556
  %v599 = vpack.c.b16 %v559, %v558
  %v600 = vpack.c.b16 %v561, %v560
  %v601 = vpack.c.b16 %v563, %v562
  %v602 = vpack.c.b16 %v565, %v564
  %v603 = vpack.c.b16 %v567, %v566
  %v604 = vpack.c.b16 %v569, %v568
  %v605 = vpack.c.b16 %v571, %v570
  %v606 = vpack.c.b16 %v573, %v572
  %v607 = vpack.c.b16 %v575, %v574
  %640 = vmatprep.subr.bf16.mxu0 0
  %641 = vmatpush1.bf16.msra.mxu0 %v583
  %642 = vmatprep.subr.bf16.mxu0 0
  %643 = vmatpush1.bf16.msra.mxu0 %v582
  %644 = vmatprep.subr.bf16.mxu0 0
  %645 = vmatpush1.bf16.msra.mxu0 %v581
  %646 = vmatprep.subr.bf16.mxu0 0
  %647 = vmatpush1.bf16.msra.mxu0 %v580
  %648 = vmatprep.subr.bf16.mxu0 0
  %649 = vmatpush1.bf16.msra.mxu0 %v579
  %650 = vmatprep.subr.bf16.mxu0 0
  %651 = vmatpush1.bf16.msra.mxu0 %v578
  %652 = vmatprep.subr.bf16.mxu0 0
  %653 = vmatpush1.bf16.msra.mxu0 %v577
  %654 = vmatprep.subr.bf16.mxu0 0
  %655 = vmatpush1.bf16.msra.mxu0 %v576
  %656 = vmatprep.subr.bf16.mxu0 0
  %657 = vmatpush2.bf16.msra.mxu0 %v591
  %658 = vmatprep.subr.bf16.mxu0 0
  %659 = vmatpush2.bf16.msra.mxu0 %v590
  %660 = vmatprep.subr.bf16.mxu0 0
  %661 = vmatpush2.bf16.msra.mxu0 %v589
  %662 = vmatprep.subr.bf16.mxu0 0
  %663 = vmatpush2.bf16.msra.mxu0 %v588
  %664 = vmatprep.subr.bf16.mxu0 0
  %665 = vmatpush2.bf16.msra.mxu0 %v587
  %666 = vmatprep.subr.bf16.mxu0 0
  %667 = vmatpush2.bf16.msra.mxu0 %v586
  %668 = vmatprep.subr.bf16.mxu0 0
  %669 = vmatpush2.bf16.msra.mxu0 %v585
  %670 = vmatprep.subr.bf16.mxu0 0
  %671 = vmatpush2.bf16.msra.mxu0 %v584
  %672 = vmatprep.mubr.bf16.mxu0 %v381
  %673 = vmatmul.mubr.bf16.gmra.mxu0 %v380
  %v674 = vpop.f32.mrf.mxu0
  %v675 = vadd.f32 0.0, %v674
  %v676 = vpop.f32.mrf.mxu0
  %v677 = vpop.f32.mrf.mxu0
  %v678 = vpop.f32.mrf.mxu0
  %679 = vdwg.mxu0
  %680 = vmatprep.subr.bf16.mxu0 0
  %681 = vmatpush1.bf16.msra.mxu0 %v599
  %682 = vmatprep.subr.bf16.mxu0 0
  %683 = vmatpush1.bf16.msra.mxu0 %v598
  %684 = vmatprep.subr.bf16.mxu0 0
  %685 = vmatpush1.bf16.msra.mxu0 %v597
  %686 = vmatprep.subr.bf16.mxu0 0
  %687 = vmatpush1.bf16.msra.mxu0 %v596
  %688 = vmatprep.subr.bf16.mxu0 0
  %689 = vmatpush1.bf16.msra.mxu0 %v595
  %690 = vmatprep.subr.bf16.mxu0 0
  %691 = vmatpush1.bf16.msra.mxu0 %v594
  %692 = vmatprep.subr.bf16.mxu0 0
  %693 = vmatpush1.bf16.msra.mxu0 %v593
  %694 = vmatprep.subr.bf16.mxu0 0
  %695 = vmatpush1.bf16.msra.mxu0 %v592
  %696 = vmatprep.subr.bf16.mxu0 0
  %697 = vmatpush2.bf16.msra.mxu0 %v607
  %698 = vmatprep.subr.bf16.mxu0 0
  %699 = vmatpush2.bf16.msra.mxu0 %v606
  %700 = vmatprep.subr.bf16.mxu0 0
  %701 = vmatpush2.bf16.msra.mxu0 %v605
  %702 = vmatprep.subr.bf16.mxu0 0
  %703 = vmatpush2.bf16.msra.mxu0 %v604
  %704 = vmatprep.subr.bf16.mxu0 0
  %705 = vmatpush2.bf16.msra.mxu0 %v603
  %706 = vmatprep.subr.bf16.mxu0 0
  %707 = vmatpush2.bf16.msra.mxu0 %v602
  %708 = vmatprep.subr.bf16.mxu0 0
  %709 = vmatpush2.bf16.msra.mxu0 %v601
  %710 = vmatprep.subr.bf16.mxu0 0
  %711 = vmatpush2.bf16.msra.mxu0 %v600
  %712 = vmatprep.mubr.bf16.mxu0 %v383
  %713 = vmatmul.mubr.bf16.gmra.mxu0 %v382
  %v714 = vpop.f32.mrf.mxu0
  %v715 = vadd.f32 %v675, %v714
  %v716 = vpop.f32.mrf.mxu0
  %v717 = vpop.f32.mrf.mxu0
  %v718 = vpop.f32.mrf.mxu0
  %719 = vdwg.mxu0
  %721 = vrot.lane.b32.xlu0 %v715, 110
  %v722 = vpop.permute.xlu0 %721
  %v724 = vmax.f32 %v715, %v722
  %v725 = vld [vmem:[%s5] sm:$0x1]
  %v727 = vlaneseq
  %v728 = vshrl.u32 %v727, 7
  %v729 = vsub.s32 0, %v728
  %v730 = vrot.slane %v725, %v729
  %v732 = vadd.f32 %v724, %v730
  %v733 = vpack.c.bf16 %v732, %v732
  %v734 = vld [vmem:[%s6] sm:$0xf]
  %v735 = vld [vmem:[%s6 + $0x4] sm:$0xf]
  %v736 = vld [vmem:[%s6 + $0x8] sm:$0x1]
  %v737 = vld [vmem:[%s1] sm:$0xff]
  %v738 = vpack.c.bf16 %v737, %v737
  %v739 = vld [vmem:[%s7] sm:$0x3]
  %vm740 = vcmask 31744
  %v742 = vsel %vm740, %v738, 0
  %vm744 = vcmask 1041408
  %v746 = vsel %vm744, %v739, 0
  %748 = vmatprep.subr.bf16.mxu0 0
  %749 = vmatpush1.bf16.msra.mxu0 0
  %750 = vmatprep.subr.bf16.mxu0 0
  %751 = vmatpush1.bf16.msra.mxu0 0
  %752 = vmatprep.subr.bf16.mxu0 0
  %753 = vmatpush1.bf16.msra.mxu0 0
  %754 = vmatprep.subr.bf16.mxu0 0
  %755 = vmatpush1.bf16.msra.mxu0 0
  %756 = vmatprep.subr.bf16.mxu0 0
  %757 = vmatpush1.bf16.msra.mxu0 0
  %758 = vmatprep.subr.bf16.mxu0 0
  %759 = vmatpush1.bf16.msra.mxu0 0
  %760 = vmatprep.subr.bf16.mxu0 0
  %761 = vmatpush1.bf16.msra.mxu0 0
  %762 = vmatprep.subr.bf16.mxu0 0
  %763 = vmatpush1.bf16.msra.mxu0 %v746
  %764 = vmatprep.subr.bf16.mxu0 0
  %765 = vmatpush2.bf16.msra.mxu0 0
  %766 = vmatprep.subr.bf16.mxu0 0
  %767 = vmatpush2.bf16.msra.mxu0 0
  %768 = vmatprep.subr.bf16.mxu0 0
  %769 = vmatpush2.bf16.msra.mxu0 0
  %770 = vmatprep.subr.bf16.mxu0 0
  %771 = vmatpush2.bf16.msra.mxu0 0
  %772 = vmatprep.subr.bf16.mxu0 0
  %773 = vmatpush2.bf16.msra.mxu0 0
  %774 = vmatprep.subr.bf16.mxu0 0
  %775 = vmatpush2.bf16.msra.mxu0 0
  %776 = vmatprep.subr.bf16.mxu0 0
  %777 = vmatpush2.bf16.msra.mxu0 0
  %778 = vmatprep.subr.bf16.mxu0 0
  %779 = vmatpush2.bf16.msra.mxu0 0
  %780 = vmatprep.mubr.bf16.mxu0 0
  %781 = vmatmul.mubr.bf16.gmra.mxu0 %v742
  %v782 = vpop.f32.mrf.mxu0
  %v783 = vadd.f32 0.0, %v782
  %v784 = vpop.f32.mrf.mxu0
  %v785 = vpop.f32.mrf.mxu0
  %v786 = vpop.f32.mrf.mxu0
  %787 = vdwg.mxu0
  %v791 = vunpack.c.l.b16 %v734
  %v792 = vunpack.c.l.b16 %v735
  %v793 = vunpack.c.l.b16 %v736
  %v794 = vpack.c.b16 %v792, %v791
  %v795 = vpack.c.b16 %v793, %v793
  %vm797 = vcmask 146432
  %v799 = vsel %vm797, %v733, 0
  %vm801 = vcmask 1040384
  %v803 = vsel %vm801, %v795, 0
  %805 = vmatprep.subr.bf16.mxu0 0
  %806 = vmatpush1.bf16.msra.mxu0 0
  %807 = vmatprep.subr.bf16.mxu0 0
  %808 = vmatpush1.bf16.msra.mxu0 0
  %809 = vmatprep.subr.bf16.mxu0 0
  %810 = vmatpush1.bf16.msra.mxu0 0
  %811 = vmatprep.subr.bf16.mxu0 0
  %812 = vmatpush1.bf16.msra.mxu0 0
  %813 = vmatprep.subr.bf16.mxu0 0
  %814 = vmatpush1.bf16.msra.mxu0 0
  %815 = vmatprep.subr.bf16.mxu0 0
  %816 = vmatpush1.bf16.msra.mxu0 0
  %817 = vmatprep.subr.bf16.mxu0 0
  %818 = vmatpush1.bf16.msra.mxu0 %v803
  %819 = vmatprep.subr.bf16.mxu0 0
  %820 = vmatpush1.bf16.msra.mxu0 %v794
  %821 = vmatprep.subr.bf16.mxu0 0
  %822 = vmatpush2.bf16.msra.mxu0 0
  %823 = vmatprep.subr.bf16.mxu0 0
  %824 = vmatpush2.bf16.msra.mxu0 0
  %825 = vmatprep.subr.bf16.mxu0 0
  %826 = vmatpush2.bf16.msra.mxu0 0
  %827 = vmatprep.subr.bf16.mxu0 0
  %828 = vmatpush2.bf16.msra.mxu0 0
  %829 = vmatprep.subr.bf16.mxu0 0
  %830 = vmatpush2.bf16.msra.mxu0 0
  %831 = vmatprep.subr.bf16.mxu0 0
  %832 = vmatpush2.bf16.msra.mxu0 0
  %833 = vmatprep.subr.bf16.mxu0 0
  %834 = vmatpush2.bf16.msra.mxu0 0
  %835 = vmatprep.subr.bf16.mxu0 0
  %836 = vmatpush2.bf16.msra.mxu0 0
  %837 = vmatprep.mubr.bf16.mxu0 0
  %838 = vmatmul.mubr.bf16.gmra.mxu0 %v799
  %v839 = vpop.f32.mrf.mxu0
  %v840 = vadd.f32 %v783, %v839
  %v841 = vpop.f32.mrf.mxu0
  %v842 = vpop.f32.mrf.mxu0
  %v843 = vpop.f32.mrf.mxu0
  %844 = vdwg.mxu0
  %v845 = vld [vmem:[#allocation2] sm:$0x1]
  %v847 = vlaneseq
  %v848 = vshrl.u32 %v847, 7
  %v849 = vsub.s32 0, %v848
  %v850 = vrot.slane %v845, %v849
  %v852 = vadd.f32 %v840, %v850
  %vm853 = vcmask 7168
  %854 = vst.msk [vmem:[%s9] sm:$0xff] %vm853, %v852
  // Predicated region
  $region38: #{cnn_forward.1} parent=0 // pred_check
    _
  $region39: #{cnn_forward.1} parent=0 // pred_check_branch
    %856 = sbr.rel (0) target = $region41
  $region40: #{cnn_forward.1} parent=0 // pred_region
    _
  $region41: #{cnn_forward.1} parent=0 // pred_fallthru
    _
  // Predicated region
  $region42: #{cnn_forward.1} parent=0 // pred_check
    _
  $region43: #{cnn_forward.1} parent=0 // pred_check_branch
    %858 = sbr.rel (0) target = $region45
  $region44: #{cnn_forward.1} parent=0 // pred_region
    _
  $region45: #{cnn_forward.1} parent=0 // pred_fallthru
    _

</llo_original>
